<compile_context>
chip_gen: v7x
topology: tpu7x:2x2x1
jax: 0.10.0
libtpu: 0.0.40
codegen_flags: <defaults>
</compile_context>

<pallas_src>
import functools

import jax
import jax.numpy as jnp
from jax import lax
from jax.experimental import pallas as pl
from jax.experimental.pallas import tpu as pltpu


# ----------------------------------------------------------------------------
# Kernel 1: fused projections + RMSNorm + RoPE, tiled over the B*S row axis.
#   proj = x @ [w_query*scale | wkv_a]          (single MXU matmul)
#   kv_d = RMSNorm(kv_compressed) @ wkv_b        (fused)
#   RoPE applied to k_pe and to every q head's pe lanes (pair-swap matmul trick)
#   q emitted head-major [H, N, dq], kv_d head-major [Hkv, N, dn+dv]
# ----------------------------------------------------------------------------
def _mla_proj_kernel(x_ref, w1_ref, kvnw_ref, wb_ref, cos_ref, sin_ref, rot_ref,
                     q_ref, kpe_ref, kvd_ref, *, eps, dn, mxu_dtype):
    H, dq = q_ref.shape[0], q_ref.shape[2]
    Hkv, wk = kvd_ref.shape[0], kvd_ref.shape[2]
    r = wb_ref.shape[0]
    hq = H * dq

    proj = jnp.dot(x_ref[...].astype(mxu_dtype), w1_ref[...].astype(mxu_dtype),
                   preferred_element_type=jnp.float32)          # [tm, hq + r + dr]

    kv_c = proj[:, hq:hq + r]
    k_pe = proj[:, hq + r:]

    # RMSNorm on the compressed KV latent (fp32 math) + decompress projection.
    var = jnp.mean(kv_c * kv_c, axis=-1, keepdims=True)
    kv_n = kv_c * lax.rsqrt(var + eps) * kvnw_ref[...].astype(jnp.float32)
    kv_d = jnp.dot(kv_n.astype(mxu_dtype), wb_ref[...].astype(mxu_dtype),
                   preferred_element_type=jnp.float32)          # [tm, Hkv*wk]

    cos = cos_ref[...]                                          # [tm, dr] fp32
    sin = sin_ref[...]
    rot = rot_ref[...]                                          # [dr, dr] exact +/-1

    def rope(v):
        # interleaved-pair RoPE; the pair swap is an exact tiny matmul (no strided
        # lane slicing, stays on the MXU).  Kept fp32: negligible cost, exact math.
        return v * cos + jnp.dot(v, rot, preferred_element_type=jnp.float32) * sin

    kpe_ref[...] = rope(k_pe).astype(kpe_ref.dtype)

    # Emit q head-major [H, tm, dq] with RoPE already applied to the pe lanes so the
    # attention kernel can slice GQA groups along a leading (untiled) dim.
    # TODO(synk): for very large H, move the head axis onto the grid instead.
    for h in range(H):
        qh = proj[:, h * dq:(h + 1) * dq]
        if dn > 0:
            q_ref[h, :, :dn] = qh[:, :dn].astype(q_ref.dtype)
        q_ref[h, :, dn:] = rope(qh[:, dn:]).astype(q_ref.dtype)

    for h in range(Hkv):
        kvd_ref[h] = kv_d[:, h * wk:(h + 1) * wk].astype(kvd_ref.dtype)


def pallas_mla_proj(xf, w1, kv_norm_w, wkv_b, cos_tab, sin_tab, rot, *,
                    num_heads, n_kv_heads, qk_head_dim, qk_nope_head_dim, eps,
                    mxu_dtype, interm_dtype, row_tile=256):
    """xf: [N, d_in] -> (q [H, N, dq], k_pe [N, dr], kv_d [Hkv, N, dn+dv])."""
    N, d_in = xf.shape
    H, Hkv, dq, dn = num_heads, n_kv_heads, qk_head_dim, qk_nope_head_dim
    dr = dq - dn
    r = wkv_b.shape[0]
    wk = wkv_b.shape[1] // Hkv

    tm = N if N <= row_tile else row_tile        # full block, or a multiple-of-8 tile
    grid = (pl.cdiv(N, tm),)

    kernel = functools.partial(_mla_proj_kernel, eps=eps, dn=dn, mxu_dtype=mxu_dtype)
    return pl.pallas_call(
        kernel,
        out_shape=(
            jax.ShapeDtypeStruct((H, N, dq), interm_dtype),
            jax.ShapeDtypeStruct((N, dr), interm_dtype),
            jax.ShapeDtypeStruct((Hkv, N, wk), interm_dtype),
        ),
        grid_spec=pltpu.PrefetchScalarGridSpec(
            num_scalar_prefetch=0,
            grid=grid,
            in_specs=[
                pl.BlockSpec((tm, d_in), lambda i: (i, 0)),             # x rows (pipelined)
                pl.BlockSpec((d_in, w1.shape[1]), lambda i: (0, 0)),    # resident weights
                pl.BlockSpec((1, r), lambda i: (0, 0)),
                pl.BlockSpec((r, wkv_b.shape[1]), lambda i: (0, 0)),
                pl.BlockSpec((tm, dr), lambda i: (i, 0)),               # RoPE cos table
                pl.BlockSpec((tm, dr), lambda i: (i, 0)),               # RoPE sin table
                pl.BlockSpec((dr, dr), lambda i: (0, 0)),               # pair-swap matrix
            ],
            out_specs=(
                pl.BlockSpec((H, tm, dq), lambda i: (0, i, 0)),
                pl.BlockSpec((tm, dr), lambda i: (i, 0)),
                pl.BlockSpec((Hkv, tm, wk), lambda i: (0, i, 0)),
            ),
        ),
        compiler_params=pltpu.CompilerParams(dimension_semantics=("parallel",)),
    )(xf, w1, kv_norm_w.reshape(1, r), wkv_b, cos_tab, sin_tab, rot)


# ----------------------------------------------------------------------------
# Kernel 2: attention, looped over KV heads with merged GQA groups, fused out_proj.
# ----------------------------------------------------------------------------
def _mla_attn_kernel(q_ref, kvd_ref, kpe_ref, wo_ref, o_ref, *,
                     softcap, n_kv_groups, dn, mxu_dtype, approx_recip):
    # q_ref:   [H, 1, tq, dq]   head-major; RoPE + softmax scale already applied
    # kvd_ref: [Hkv, 1, S, dn+dv]
    # kpe_ref: [1, S, dr]       shared across kv heads (GQA broadcast never built)
    # wo_ref:  [H, dv, d_out]
    # o_ref:   [1, tq, d_out]   lane-dense output
    H, _, tq, dq = q_ref.shape
    Hkv, _, S, wk = kvd_ref.shape
    dv = wk - dn
    d_out = o_ref.shape[-1]
    G = n_kv_groups

    # causal mask (diagonal kept), computed once with absolute query positions
    q0 = pl.program_id(1) * tq
    rows = q0 + lax.broadcasted_iota(jnp.int32, (tq, S), 0)
    cols = lax.broadcasted_iota(jnp.int32, (tq, S), 1)
    masked = cols > rows

    k_pe = kpe_ref[0].astype(mxu_dtype)                              # [S, dr]

    def kv_head_body(kvh, acc):
        # GQA: the G query heads of this kv head, sliced on a leading (untiled) dim.
        q_g = q_ref[pl.ds(kvh * G, G)][:, 0]                         # [G, tq, dq]
        kv_h = kvd_ref[kvh][0]                                       # [S, dn+dv]
        v_h = kv_h[:, dn:].astype(mxu_dtype)                         # [S, dv]

        # scores = q_nope . k_nope^T + q_pe . k_pe^T  (no nope/pe concat materialized)
        qp2 = q_g[..., dn:].reshape(G * tq, dq - dn).astype(mxu_dtype)
        s2 = lax.dot_general(qp2, k_pe, (((1,), (1,)), ((), ())),
                             preferred_element_type=jnp.float32)     # [G*tq, S]
        if dn > 0:
            qn2 = q_g[..., :dn].reshape(G * tq, dn).astype(mxu_dtype)
            k_n = kv_h[:, :dn].astype(mxu_dtype)
            s2 = s2 + lax.dot_general(qn2, k_n, (((1,), (1,)), ((), ())),
                                      preferred_element_type=jnp.float32)

        s3 = s2.reshape(G, tq, S)                                    # fp32 softmax stats
        if softcap is not None:
            s3 = jnp.tanh(s3 / softcap) * softcap
        s3 = jnp.where(masked[None], -jnp.inf, s3)

        m = jnp.max(s3, axis=-1, keepdims=True)
        p3 = jnp.exp(s3 - m)
        l = jnp.sum(p3, axis=-1, keepdims=True)

        # un-normalized PV, then normalize the [*, dv] result (dv << S VPU muls)
        o2 = jnp.dot(p3.reshape(G * tq, S).astype(mxu_dtype), v_h,
                     preferred_element_type=jnp.float32)             # [G*tq, dv]
        o3 = o2.reshape(G, tq, dv) * pl.reciprocal(l, approx=approx_recip)

        # out_proj accumulated per head in fp32 (no head concat, single final store)
        for g in range(G):
            wo_h = wo_ref[kvh * G + g].astype(mxu_dtype)             # [dv, d_out]
            acc = acc + jnp.dot(o3[g].astype(mxu_dtype), wo_h,
                                preferred_element_type=jnp.float32)  # [tq, d_out]
        return acc

    acc = lax.fori_loop(0, Hkv, kv_head_body,
                        jnp.zeros((tq, d_out), jnp.float32), unroll=True)
    o_ref[0] = acc.astype(o_ref.dtype)


def pallas_mla_attention(q_hm, kvd_hm, kpe, wo_hm, *, softcap, n_kv_groups,
                         qk_nope_head_dim, mxu_dtype, out_dtype, q_tile=256):
    """q_hm: [H,B,S,dq], kvd_hm: [Hkv,B,S,dn+dv], kpe: [B,S,dr], wo_hm: [H,dv,d_out]
       -> [B, S, d_out]  (dropout=0 identity; out_proj fused, lane-dense output)."""
    H, B, S, dq = q_hm.shape
    Hkv, wk = kvd_hm.shape[0], kvd_hm.shape[3]
    dr = kpe.shape[-1]
    dn = qk_nope_head_dim
    dv = wk - dn
    d_out = wo_hm.shape[-1]

    tq = S if S <= q_tile else q_tile
    approx_recip = (mxu_dtype == jnp.bfloat16)   # EUP vrcp in the production path

    kernel = functools.partial(_mla_attn_kernel, softcap=softcap,
                               n_kv_groups=n_kv_groups, dn=dn,
                               mxu_dtype=mxu_dtype, approx_recip=approx_recip)
    # TODO(synk): set vmem_limit_bytes per chip generation (64 MiB physical on v7x) and
    # switch to a flash-style KV-tiled reduction once S stops fitting in one block.
    return pl.pallas_call(
        kernel,
        out_shape=jax.ShapeDtypeStruct((B, S, d_out), out_dtype),
        grid_spec=pltpu.PrefetchScalarGridSpec(
            num_scalar_prefetch=0,
            grid=(B, pl.cdiv(S, tq)),
            in_specs=[
                pl.BlockSpec((H, 1, tq, dq), lambda b, qi: (0, b, qi, 0)),
                pl.BlockSpec((Hkv, 1, S, wk), lambda b, qi: (0, b, 0, 0)),
                pl.BlockSpec((1, S, dr), lambda b, qi: (b, 0, 0)),
                pl.BlockSpec((H, dv, d_out), lambda b, qi: (0, 0, 0)),
            ],
            out_specs=pl.BlockSpec((1, tq, d_out), lambda b, qi: (b, qi, 0)),
        ),
        compiler_params=pltpu.CompilerParams(
            dimension_semantics=("parallel", "parallel")),
    )(q_hm, kvd_hm, kpe, wo_hm)


# ----------------------------------------------------------------------------
# Config, params and one-time derived constants (fused weights, RoPE tables)
# ----------------------------------------------------------------------------
class MLAConfig:
    d_in = 32
    d_out = 32
    num_heads = 4
    n_kv_heads = 2                      # -> n_kv_groups = 2 (exercises repeat_interleave)
    head_dim = d_out // num_heads       # 8
    qk_rope_head_dim = 4
    qk_nope_head_dim = head_dim - qk_rope_head_dim      # 4
    qk_head_dim = qk_nope_head_dim + qk_rope_head_dim   # 8
    v_head_dim = head_dim               # 8
    kv_lora_rank = d_in // 2            # 16
    rope_theta = 10000.0
    softcap = None
    max_seq_len = 8
    softmax_scale = qk_head_dim ** (-0.5)
    n_kv_groups = num_heads // n_kv_heads


def init_params(key, cfg, dtype=jnp.float32):
    ks = jax.random.split(key, 4)
    std = 0.02
    # nn.Linear weights are [out, in]; store transposed [in, out] for x @ W
    return {
        "w_query": std * jax.random.normal(
            ks[0], (cfg.d_in, cfg.num_heads * cfg.qk_head_dim), dtype),
        "wkv_a": std * jax.random.normal(
            ks[1], (cfg.d_in, cfg.kv_lora_rank + cfg.qk_rope_head_dim), dtype),
        "wkv_b": std * jax.random.normal(
            ks[2], (cfg.kv_lora_rank,
                    cfg.n_kv_heads * (cfg.qk_nope_head_dim + cfg.v_head_dim)), dtype),
        "out_proj": std * jax.random.normal(
            ks[3], (cfg.num_heads * cfg.v_head_dim, cfg.d_out), dtype),
        "kv_norm_w": jnp.ones((cfg.kv_lora_rank,), dtype),
    }


def make_derived_params(params, cfg, B, S):
    """One-time derived tensors (per perf review): fused/pre-scaled weights,
    head-major out_proj, interleaved-pair RoPE tables and the pair-swap matrix."""
    dr = cfg.qk_rope_head_dim
    # softmax scale folded into the query projection weights (free at init time)
    w1 = jnp.concatenate(
        [params["w_query"] * cfg.softmax_scale, params["wkv_a"]], axis=1)
    wo_hm = params["out_proj"].reshape(cfg.num_heads, cfg.v_head_dim, cfg.d_out)

    half = dr // 2
    inv_freq = 1.0 / (cfg.rope_theta ** (jnp.arange(0, dr, 2, dtype=jnp.float32) / dr))
    pos = jnp.arange(S, dtype=jnp.float32)
    ang = pos[:, None] * inv_freq[None, :]                      # [S, half]
    cos = jnp.repeat(jnp.cos(ang), 2, axis=-1)                  # [S, dr], duplicated pairs
    sin = jnp.repeat(jnp.sin(ang), 2, axis=-1)
    cos_tab = jnp.tile(cos, (B, 1))                             # [B*S, dr] (flattened rows)
    sin_tab = jnp.tile(sin, (B, 1))

    # pair-swap matrix: (x @ rot)[2i] = -x[2i+1], (x @ rot)[2i+1] = x[2i]
    idx = jnp.arange(half)
    rot = jnp.zeros((dr, dr), jnp.float32)
    rot = rot.at[2 * idx + 1, 2 * idx].set(-1.0)
    rot = rot.at[2 * idx, 2 * idx + 1].set(1.0)

    return {"w1": w1, "wo_hm": wo_hm, "cos": cos_tab, "sin": sin_tab, "rot": rot}


# ----------------------------------------------------------------------------
# Pallas forward: only free reshapes between the two kernels
# ----------------------------------------------------------------------------
def mla_forward_pallas(x, params, derived, cfg, mxu_dtype=jnp.bfloat16):
    B, S, _ = x.shape
    H, Hkv = cfg.num_heads, cfg.n_kv_heads
    dn, dr, dv, dq = (cfg.qk_nope_head_dim, cfg.qk_rope_head_dim,
                      cfg.v_head_dim, cfg.qk_head_dim)
    interm_dtype = mxu_dtype   # bf16 intermediates halve inter-kernel HBM traffic

    xf = x.reshape(B * S, cfg.d_in)
    q_hm, kpe, kvd_hm = pallas_mla_proj(
        xf, derived["w1"], params["kv_norm_w"], params["wkv_b"],
        derived["cos"], derived["sin"], derived["rot"],
        num_heads=H, n_kv_heads=Hkv, qk_head_dim=dq, qk_nope_head_dim=dn,
        eps=1e-6, mxu_dtype=mxu_dtype, interm_dtype=interm_dtype)

    # Only metadata reshapes here (no transpose / concat / broadcast HBM passes).
    q_hm = q_hm.reshape(H, B, S, dq)
    kvd_hm = kvd_hm.reshape(Hkv, B, S, dn + dv)
    kpe = kpe.reshape(B, S, dr)

    return pallas_mla_attention(
        q_hm, kvd_hm, kpe, derived["wo_hm"],
        softcap=cfg.softcap, n_kv_groups=cfg.n_kv_groups, qk_nope_head_dim=dn,
        mxu_dtype=mxu_dtype, out_dtype=x.dtype)


# ----------------------------------------------------------------------------
# Pure-JAX reference (mirrors the PyTorch module, incl. materialized GQA repeat)
# ----------------------------------------------------------------------------
def apply_rope(x, theta_base):
    # x: [B, S, H, D], interleaved-pair convention (torchtune RotaryPositionalEmbeddings)
    B, S, H, D = x.shape
    half = D // 2
    inv_freq = 1.0 / (theta_base ** (jnp.arange(0, D, 2, dtype=jnp.float32) / D))
    pos = jnp.arange(S, dtype=jnp.float32)
    ang = pos[:, None] * inv_freq[None, :]
    cos = jnp.cos(ang)[None, :, None, :]
    sin = jnp.sin(ang)[None, :, None, :]
    xr = x.astype(jnp.float32).reshape(B, S, H, half, 2)
    x0, x1 = xr[..., 0], xr[..., 1]
    o0 = x0 * cos - x1 * sin
    o1 = x1 * cos + x0 * sin
    return jnp.stack([o0, o1], axis=-1).reshape(B, S, H, D).astype(x.dtype)


def mla_forward_reference(x, params, cfg):
    B, S, _ = x.shape
    H, Hkv = cfg.num_heads, cfg.n_kv_heads
    dn, dr, dv = cfg.qk_nope_head_dim, cfg.qk_rope_head_dim, cfg.v_head_dim
    dq = cfg.qk_head_dim
    r = cfg.kv_lora_rank

    xf = x.reshape(B * S, cfg.d_in)
    q_flat = xf @ params["w_query"]
    kv = xf @ params["wkv_a"]
    kv_c, kpe_flat = kv[:, :r], kv[:, r:]
    kv_n = (kv_c * lax.rsqrt(jnp.mean(kv_c * kv_c, -1, keepdims=True) + 1e-6)
            * params["kv_norm_w"])
    kvd_flat = kv_n @ params["wkv_b"]

    q_all = q_flat.reshape(B, S, H, dq)
    k_pe = kpe_flat.reshape(B, S, 1, dr)
    kv_d = kvd_flat.reshape(B, S, Hkv, dn + dv)
    k_nope, values = kv_d[..., :dn], kv_d[..., dn:]
    q_nope, q_pe = q_all[..., :dn], q_all[..., dn:]

    k_pe = jnp.broadcast_to(k_pe, (B, S, Hkv, dr))
    q_pe = apply_rope(q_pe, cfg.rope_theta)
    k_pe = apply_rope(k_pe, cfg.rope_theta)

    queries = jnp.concatenate([q_nope, q_pe], axis=-1)
    keys = jnp.concatenate([k_nope, k_pe], axis=-1)

    q_t = jnp.transpose(queries, (0, 2, 1, 3))
    k_t = jnp.transpose(keys, (0, 2, 1, 3))
    v_t = jnp.transpose(values, (0, 2, 1, 3))
    if cfg.n_kv_groups > 1:
        k_t = jnp.repeat(k_t, cfg.n_kv_groups, axis=1)
        v_t = jnp.repeat(v_t, cfg.n_kv_groups, axis=1)

    s = jnp.einsum("bhqd,bhkd->bhqk", q_t, k_t) * cfg.softmax_scale
    if cfg.softcap is not None:
        s = jnp.tanh(s / cfg.softcap) * cfg.softcap
    mask = jnp.triu(jnp.ones((S, S), bool), 1)
    s = jnp.where(mask[None, None], -jnp.inf, s)
    p = jax.nn.softmax(s.astype(jnp.float32), axis=-1).astype(x.dtype)
    attn = jnp.einsum("bhqk,bhkd->bhqd", p, v_t)
    attn = attn.transpose(0, 2, 1, 3).reshape(B, S, H * dv)
    return (attn.reshape(B * S, H * dv) @ params["out_proj"]).reshape(B, S, cfg.d_out)


# ----------------------------------------------------------------------------
if __name__ == "__main__":
    cfg = MLAConfig()
    key = jax.random.PRNGKey(0)
    kx, kp = jax.random.split(key)

    B, S = 2, cfg.max_seq_len
    x = jax.random.normal(kx, (B, S, cfg.d_in), jnp.float32)
    params = init_params(kp, cfg, jnp.float32)
    derived = make_derived_params(params, cfg, B, S)

    ref = jax.block_until_ready(mla_forward_reference(x, params, cfg))

    # fp32 MXU path: tight parity against the fp32 reference.
    out_fp32 = jax.block_until_ready(
        mla_forward_pallas(x, params, derived, cfg, mxu_dtype=jnp.float32))
    assert out_fp32.shape == (B, S, cfg.d_out), out_fp32.shape
    assert jnp.allclose(out_fp32, ref, atol=5e-5, rtol=5e-5), float(
        jnp.max(jnp.abs(out_fp32 - ref)))

    # bf16 MXU production path (fp32 softmax stats / accumulators): loose tolerance.
    out_bf16 = jax.block_until_ready(
        mla_forward_pallas(x, params, derived, cfg, mxu_dtype=jnp.bfloat16))
    assert out_bf16.shape == (B, S, cfg.d_out), out_bf16.shape
    assert bool(jnp.all(jnp.isfinite(out_bf16)))
    assert jnp.allclose(out_bf16, ref, atol=5e-3, rtol=5e-2), float(
        jnp.max(jnp.abs(out_bf16 - ref)))

    print("KERNEL_OK")
</pallas_src>

<mosaic_0001>
module attributes {stable_mosaic.version = 11 : i64} {
  func.func @_mla_proj_kernel(%arg0: i32, %arg1: memref<16x32xf32, #tpu.memory_space<vmem>>, %arg2: memref<32x52xf32, #tpu.memory_space<vmem>>, %arg3: memref<1x16xf32, #tpu.memory_space<vmem>>, %arg4: memref<16x24xf32, #tpu.memory_space<vmem>>, %arg5: memref<16x4xf32, #tpu.memory_space<vmem>>, %arg6: memref<16x4xf32, #tpu.memory_space<vmem>>, %arg7: memref<4x4xf32, #tpu.memory_space<vmem>>, %arg8: memref<4x16x8xf32, #tpu.memory_space<vmem>>, %arg9: memref<16x4xf32, #tpu.memory_space<vmem>>, %arg10: memref<2x16x12xf32, #tpu.memory_space<vmem>>) attributes {dimension_semantics = [#tpu.dimension_semantics<parallel>], iteration_bounds = array<i64: 1>, scalar_prefetch = 0 : i64, scratch_operands = 0 : i64, tpu.core_type = #tpu.core_type<tc>, window_params = [{transform_indices = @transform_0, window_bounds = array<i64: 16, 32>}, {pipeline_mode = #tpu.pipeline_mode<synchronous>, transform_indices = @transform_1, window_bounds = array<i64: 32, 52>}, {pipeline_mode = #tpu.pipeline_mode<synchronous>, transform_indices = @transform_2, window_bounds = array<i64: 1, 16>}, {pipeline_mode = #tpu.pipeline_mode<synchronous>, transform_indices = @transform_3, window_bounds = array<i64: 16, 24>}, {transform_indices = @transform_4, window_bounds = array<i64: 16, 4>}, {transform_indices = @transform_5, window_bounds = array<i64: 16, 4>}, {pipeline_mode = #tpu.pipeline_mode<synchronous>, transform_indices = @transform_6, window_bounds = array<i64: 4, 4>}, {transform_indices = @transform_7, window_bounds = array<i64: 4, 16, 8>}, {transform_indices = @transform_8, window_bounds = array<i64: 16, 4>}, {transform_indices = @transform_9, window_bounds = array<i64: 2, 16, 12>}]} {
    %c0 = arith.constant 0 : index
    %c0_0 = arith.constant 0 : index
    %0 = vector.load %arg1[%c0, %c0_0] : memref<16x32xf32, #tpu.memory_space<vmem>>, vector<16x32xf32>
    %c0_1 = arith.constant 0 : index
    %c0_2 = arith.constant 0 : index
    %1 = vector.load %arg2[%c0_1, %c0_2] : memref<32x52xf32, #tpu.memory_space<vmem>>, vector<32x52xf32>
    %cst = arith.constant dense<0.000000e+00> : vector<16x52xf32>
    %2 = tpu.matmul %0, %1, %cst {dimension_numbers = #tpu.dot_dimension_numbers<[1], [0], [0], [1], [0, 0, 1, 1], [], []>} : vector<16x32xf32>, vector<32x52xf32>, vector<16x52xf32> -> vector<16x52xf32>
    %3 = vector.extract_strided_slice %2 {offsets = [0, 32], sizes = [16, 16], strides = [1, 1]} : vector<16x52xf32> to vector<16x16xf32>
    %4 = vector.extract_strided_slice %2 {offsets = [0, 48], sizes = [16, 4], strides = [1, 1]} : vector<16x52xf32> to vector<16x4xf32>
    %5 = arith.mulf %3, %3 : vector<16x16xf32>
    %cst_3 = arith.constant dense<0.000000e+00> : vector<16xf32>
    %6 = vector.multi_reduction <add>, %5, %cst_3 [1] : vector<16x16xf32> to vector<16xf32>
    %7 = vector.shape_cast %6 : vector<16xf32> to vector<16x1xf32>
    %cst_4 = arith.constant 1.600000e+01 : f32
    %8 = vector.broadcast %cst_4 : f32 to vector<16x1xf32>
    %9 = arith.divf %7, %8 : vector<16x1xf32>
    %cst_5 = arith.constant 9.99999997E-7 : f32
    %10 = vector.broadcast %cst_5 : f32 to vector<16x1xf32>
    %11 = arith.addf %9, %10 : vector<16x1xf32>
    %12 = math.rsqrt %11 : vector<16x1xf32>
    %13 = vector.broadcast %12 : vector<16x1xf32> to vector<16x16xf32>
    %14 = arith.mulf %3, %13 : vector<16x16xf32>
    %c0_6 = arith.constant 0 : index
    %c0_7 = arith.constant 0 : index
    %15 = vector.load %arg3[%c0_6, %c0_7] : memref<1x16xf32, #tpu.memory_space<vmem>>, vector<1x16xf32>
    %16 = vector.broadcast %15 : vector<1x16xf32> to vector<16x16xf32>
    %17 = arith.mulf %14, %16 : vector<16x16xf32>
    %c0_8 = arith.constant 0 : index
    %c0_9 = arith.constant 0 : index
    %18 = vector.load %arg4[%c0_8, %c0_9] : memref<16x24xf32, #tpu.memory_space<vmem>>, vector<16x24xf32>
    %cst_10 = arith.constant dense<0.000000e+00> : vector<16x24xf32>
    %19 = tpu.matmul %17, %18, %cst_10 {dimension_numbers = #tpu.dot_dimension_numbers<[1], [0], [0], [1], [0, 0, 1, 1], [], []>} : vector<16x16xf32>, vector<16x24xf32>, vector<16x24xf32> -> vector<16x24xf32>
    %c0_11 = arith.constant 0 : index
    %c0_12 = arith.constant 0 : index
    %20 = vector.load %arg5[%c0_11, %c0_12] : memref<16x4xf32, #tpu.memory_space<vmem>>, vector<16x4xf32>
    %c0_13 = arith.constant 0 : index
    %c0_14 = arith.constant 0 : index
    %21 = vector.load %arg6[%c0_13, %c0_14] : memref<16x4xf32, #tpu.memory_space<vmem>>, vector<16x4xf32>
    %c0_15 = arith.constant 0 : index
    %c0_16 = arith.constant 0 : index
    %22 = vector.load %arg7[%c0_15, %c0_16] : memref<4x4xf32, #tpu.memory_space<vmem>>, vector<4x4xf32>
    %23 = arith.mulf %4, %20 : vector<16x4xf32>
    %cst_17 = arith.constant dense<0.000000e+00> : vector<16x4xf32>
    %24 = tpu.matmul %4, %22, %cst_17 {dimension_numbers = #tpu.dot_dimension_numbers<[1], [0], [0], [1], [0, 0, 1, 1], [], []>} : vector<16x4xf32>, vector<4x4xf32>, vector<16x4xf32> -> vector<16x4xf32>
    %25 = arith.mulf %24, %21 : vector<16x4xf32>
    %26 = arith.addf %23, %25 : vector<16x4xf32>
    %c0_18 = arith.constant 0 : index
    %c0_19 = arith.constant 0 : index
    %27 = vector.load %arg9[%c0_18, %c0_19] : memref<16x4xf32, #tpu.memory_space<vmem>>, vector<16x4xf32>
    tpu.vector_store %arg9[%c0_18, %c0_19], %26 {strides = array<i32>} : memref<16x4xf32, #tpu.memory_space<vmem>>, vector<16x4xf32>,
    %28 = vector.extract_strided_slice %2 {offsets = [0, 0], sizes = [16, 8], strides = [1, 1]} : vector<16x52xf32> to vector<16x8xf32>
    %29 = vector.extract_strided_slice %28 {offsets = [0, 0], sizes = [16, 4], strides = [1, 1]} : vector<16x8xf32> to vector<16x4xf32>
    %c0_20 = arith.constant 0 : index
    %c0_21 = arith.constant 0 : index
    %c0_22 = arith.constant 0 : index
    %30 = vector.load %arg8[%c0_20, %c0_21, %c0_22] : memref<4x16x8xf32, #tpu.memory_space<vmem>>, vector<1x16x4xf32>
    %31 = vector.shape_cast %30 : vector<1x16x4xf32> to vector<16x4xf32>
    %32 = vector.shape_cast %29 : vector<16x4xf32> to vector<1x16x4xf32>
    tpu.vector_store %arg8[%c0_20, %c0_21, %c0_22], %32 {strides = array<i32>} : memref<4x16x8xf32, #tpu.memory_space<vmem>>, vector<1x16x4xf32>,
    %33 = vector.extract_strided_slice %28 {offsets = [0, 4], sizes = [16, 4], strides = [1, 1]} : vector<16x8xf32> to vector<16x4xf32>
    %34 = arith.mulf %33, %20 : vector<16x4xf32>
    %cst_23 = arith.constant dense<0.000000e+00> : vector<16x4xf32>
    %35 = tpu.matmul %33, %22, %cst_23 {dimension_numbers = #tpu.dot_dimension_numbers<[1], [0], [0], [1], [0, 0, 1, 1], [], []>} : vector<16x4xf32>, vector<4x4xf32>, vector<16x4xf32> -> vector<16x4xf32>
    %36 = arith.mulf %35, %21 : vector<16x4xf32>
    %37 = arith.addf %34, %36 : vector<16x4xf32>
    %c0_24 = arith.constant 0 : index
    %c0_25 = arith.constant 0 : index
    %c4 = arith.constant 4 : index
    %38 = vector.load %arg8[%c0_24, %c0_25, %c4] : memref<4x16x8xf32, #tpu.memory_space<vmem>>, vector<1x16x4xf32>
    %39 = vector.shape_cast %38 : vector<1x16x4xf32> to vector<16x4xf32>
    %40 = vector.shape_cast %37 : vector<16x4xf32> to vector<1x16x4xf32>
    tpu.vector_store %arg8[%c0_24, %c0_25, %c4], %40 {strides = array<i32>} : memref<4x16x8xf32, #tpu.memory_space<vmem>>, vector<1x16x4xf32>,
    %41 = vector.extract_strided_slice %2 {offsets = [0, 8], sizes = [16, 8], strides = [1, 1]} : vector<16x52xf32> to vector<16x8xf32>
    %42 = vector.extract_strided_slice %41 {offsets = [0, 0], sizes = [16, 4], strides = [1, 1]} : vector<16x8xf32> to vector<16x4xf32>
    %c1 = arith.constant 1 : index
    %c0_26 = arith.constant 0 : index
    %c0_27 = arith.constant 0 : index
    %43 = vector.load %arg8[%c1, %c0_26, %c0_27] : memref<4x16x8xf32, #tpu.memory_space<vmem>>, vector<1x16x4xf32>
    %44 = vector.shape_cast %43 : vector<1x16x4xf32> to vector<16x4xf32>
    %45 = vector.shape_cast %42 : vector<16x4xf32> to vector<1x16x4xf32>
    tpu.vector_store %arg8[%c1, %c0_26, %c0_27], %45 {strides = array<i32>} : memref<4x16x8xf32, #tpu.memory_space<vmem>>, vector<1x16x4xf32>,
    %46 = vector.extract_strided_slice %41 {offsets = [0, 4], sizes = [16, 4], strides = [1, 1]} : vector<16x8xf32> to vector<16x4xf32>
    %47 = arith.mulf %46, %20 : vector<16x4xf32>
    %cst_28 = arith.constant dense<0.000000e+00> : vector<16x4xf32>
    %48 = tpu.matmul %46, %22, %cst_28 {dimension_numbers = #tpu.dot_dimension_numbers<[1], [0], [0], [1], [0, 0, 1, 1], [], []>} : vector<16x4xf32>, vector<4x4xf32>, vector<16x4xf32> -> vector<16x4xf32>
    %49 = arith.mulf %48, %21 : vector<16x4xf32>
    %50 = arith.addf %47, %49 : vector<16x4xf32>
    %c1_29 = arith.constant 1 : index
    %c0_30 = arith.constant 0 : index
    %c4_31 = arith.constant 4 : index
    %51 = vector.load %arg8[%c1_29, %c0_30, %c4_31] : memref<4x16x8xf32, #tpu.memory_space<vmem>>, vector<1x16x4xf32>
    %52 = vector.shape_cast %51 : vector<1x16x4xf32> to vector<16x4xf32>
    %53 = vector.shape_cast %50 : vector<16x4xf32> to vector<1x16x4xf32>
    tpu.vector_store %arg8[%c1_29, %c0_30, %c4_31], %53 {strides = array<i32>} : memref<4x16x8xf32, #tpu.memory_space<vmem>>, vector<1x16x4xf32>,
    %54 = vector.extract_strided_slice %2 {offsets = [0, 16], sizes = [16, 8], strides = [1, 1]} : vector<16x52xf32> to vector<16x8xf32>
    %55 = vector.extract_strided_slice %54 {offsets = [0, 0], sizes = [16, 4], strides = [1, 1]} : vector<16x8xf32> to vector<16x4xf32>
    %c2 = arith.constant 2 : index
    %c0_32 = arith.constant 0 : index
    %c0_33 = arith.constant 0 : index
    %56 = vector.load %arg8[%c2, %c0_32, %c0_33] : memref<4x16x8xf32, #tpu.memory_space<vmem>>, vector<1x16x4xf32>
    %57 = vector.shape_cast %56 : vector<1x16x4xf32> to vector<16x4xf32>
    %58 = vector.shape_cast %55 : vector<16x4xf32> to vector<1x16x4xf32>
    tpu.vector_store %arg8[%c2, %c0_32, %c0_33], %58 {strides = array<i32>} : memref<4x16x8xf32, #tpu.memory_space<vmem>>, vector<1x16x4xf32>,
    %59 = vector.extract_strided_slice %54 {offsets = [0, 4], sizes = [16, 4], strides = [1, 1]} : vector<16x8xf32> to vector<16x4xf32>
    %60 = arith.mulf %59, %20 : vector<16x4xf32>
    %cst_34 = arith.constant dense<0.000000e+00> : vector<16x4xf32>
    %61 = tpu.matmul %59, %22, %cst_34 {dimension_numbers = #tpu.dot_dimension_numbers<[1], [0], [0], [1], [0, 0, 1, 1], [], []>} : vector<16x4xf32>, vector<4x4xf32>, vector<16x4xf32> -> vector<16x4xf32>
    %62 = arith.mulf %61, %21 : vector<16x4xf32>
    %63 = arith.addf %60, %62 : vector<16x4xf32>
    %c2_35 = arith.constant 2 : index
    %c0_36 = arith.constant 0 : index
    %c4_37 = arith.constant 4 : index
    %64 = vector.load %arg8[%c2_35, %c0_36, %c4_37] : memref<4x16x8xf32, #tpu.memory_space<vmem>>, vector<1x16x4xf32>
    %65 = vector.shape_cast %64 : vector<1x16x4xf32> to vector<16x4xf32>
    %66 = vector.shape_cast %63 : vector<16x4xf32> to vector<1x16x4xf32>
    tpu.vector_store %arg8[%c2_35, %c0_36, %c4_37], %66 {strides = array<i32>} : memref<4x16x8xf32, #tpu.memory_space<vmem>>, vector<1x16x4xf32>,
    %67 = vector.extract_strided_slice %2 {offsets = [0, 24], sizes = [16, 8], strides = [1, 1]} : vector<16x52xf32> to vector<16x8xf32>
    %68 = vector.extract_strided_slice %67 {offsets = [0, 0], sizes = [16, 4], strides = [1, 1]} : vector<16x8xf32> to vector<16x4xf32>
    %c3 = arith.constant 3 : index
    %c0_38 = arith.constant 0 : index
    %c0_39 = arith.constant 0 : index
    %69 = vector.load %arg8[%c3, %c0_38, %c0_39] : memref<4x16x8xf32, #tpu.memory_space<vmem>>, vector<1x16x4xf32>
    %70 = vector.shape_cast %69 : vector<1x16x4xf32> to vector<16x4xf32>
    %71 = vector.shape_cast %68 : vector<16x4xf32> to vector<1x16x4xf32>
    tpu.vector_store %arg8[%c3, %c0_38, %c0_39], %71 {strides = array<i32>} : memref<4x16x8xf32, #tpu.memory_space<vmem>>, vector<1x16x4xf32>,
    %72 = vector.extract_strided_slice %67 {offsets = [0, 4], sizes = [16, 4], strides = [1, 1]} : vector<16x8xf32> to vector<16x4xf32>
    %73 = arith.mulf %72, %20 : vector<16x4xf32>
    %cst_40 = arith.constant dense<0.000000e+00> : vector<16x4xf32>
    %74 = tpu.matmul %72, %22, %cst_40 {dimension_numbers = #tpu.dot_dimension_numbers<[1], [0], [0], [1], [0, 0, 1, 1], [], []>} : vector<16x4xf32>, vector<4x4xf32>, vector<16x4xf32> -> vector<16x4xf32>
    %75 = arith.mulf %74, %21 : vector<16x4xf32>
    %76 = arith.addf %73, %75 : vector<16x4xf32>
    %c3_41 = arith.constant 3 : index
    %c0_42 = arith.constant 0 : index
    %c4_43 = arith.constant 4 : index
    %77 = vector.load %arg8[%c3_41, %c0_42, %c4_43] : memref<4x16x8xf32, #tpu.memory_space<vmem>>, vector<1x16x4xf32>
    %78 = vector.shape_cast %77 : vector<1x16x4xf32> to vector<16x4xf32>
    %79 = vector.shape_cast %76 : vector<16x4xf32> to vector<1x16x4xf32>
    tpu.vector_store %arg8[%c3_41, %c0_42, %c4_43], %79 {strides = array<i32>} : memref<4x16x8xf32, #tpu.memory_space<vmem>>, vector<1x16x4xf32>,
    %80 = vector.extract_strided_slice %19 {offsets = [0, 0], sizes = [16, 12], strides = [1, 1]} : vector<16x24xf32> to vector<16x12xf32>
    %c0_44 = arith.constant 0 : index
    %c0_45 = arith.constant 0 : index
    %c0_46 = arith.constant 0 : index
    %81 = vector.load %arg10[%c0_44, %c0_45, %c0_46] : memref<2x16x12xf32, #tpu.memory_space<vmem>>, vector<1x16x12xf32>
    %82 = vector.shape_cast %81 : vector<1x16x12xf32> to vector<16x12xf32>
    %83 = vector.shape_cast %80 : vector<16x12xf32> to vector<1x16x12xf32>
    tpu.vector_store %arg10[%c0_44, %c0_45, %c0_46], %83 {strides = array<i32>} : memref<2x16x12xf32, #tpu.memory_space<vmem>>, vector<1x16x12xf32>,
    %84 = vector.extract_strided_slice %19 {offsets = [0, 12], sizes = [16, 12], strides = [1, 1]} : vector<16x24xf32> to vector<16x12xf32>
    %c1_47 = arith.constant 1 : index
    %c0_48 = arith.constant 0 : index
    %c0_49 = arith.constant 0 : index
    %85 = vector.load %arg10[%c1_47, %c0_48, %c0_49] : memref<2x16x12xf32, #tpu.memory_space<vmem>>, vector<1x16x12xf32>
    %86 = vector.shape_cast %85 : vector<1x16x12xf32> to vector<16x12xf32>
    %87 = vector.shape_cast %84 : vector<16x12xf32> to vector<1x16x12xf32>
    tpu.vector_store %arg10[%c1_47, %c0_48, %c0_49], %87 {strides = array<i32>} : memref<2x16x12xf32, #tpu.memory_space<vmem>>, vector<1x16x12xf32>,
    return
  }
  func.func @transform_0(%arg0: i32) -> (i32, i32) {
    %c0_i32 = arith.constant 0 : i32
    %c0_i32_0 = arith.constant 0 : i32
    return %arg0, %c0_i32 : i32, i32
  }
  func.func @transform_1(%arg0: i32) -> (i32, i32) {
    %c0_i32 = arith.constant 0 : i32
    %c0_i32_0 = arith.constant 0 : i32
    %c0_i32_1 = arith.constant 0 : i32
    return %c0_i32, %c0_i32_0 : i32, i32
  }
  func.func @transform_2(%arg0: i32) -> (i32, i32) {
    %c0_i32 = arith.constant 0 : i32
    %c0_i32_0 = arith.constant 0 : i32
    %c0_i32_1 = arith.constant 0 : i32
    return %c0_i32, %c0_i32_0 : i32, i32
  }
  func.func @transform_3(%arg0: i32) -> (i32, i32) {
    %c0_i32 = arith.constant 0 : i32
    %c0_i32_0 = arith.constant 0 : i32
    %c0_i32_1 = arith.constant 0 : i32
    return %c0_i32, %c0_i32_0 : i32, i32
  }
  func.func @transform_4(%arg0: i32) -> (i32, i32) {
    %c0_i32 = arith.constant 0 : i32
    %c0_i32_0 = arith.constant 0 : i32
    return %arg0, %c0_i32 : i32, i32
  }
  func.func @transform_5(%arg0: i32) -> (i32, i32) {
    %c0_i32 = arith.constant 0 : i32
    %c0_i32_0 = arith.constant 0 : i32
    return %arg0, %c0_i32 : i32, i32
  }
  func.func @transform_6(%arg0: i32) -> (i32, i32) {
    %c0_i32 = arith.constant 0 : i32
    %c0_i32_0 = arith.constant 0 : i32
    %c0_i32_1 = arith.constant 0 : i32
    return %c0_i32, %c0_i32_0 : i32, i32
  }
  func.func @transform_7(%arg0: i32) -> (i32, i32, i32) {
    %c0_i32 = arith.constant 0 : i32
    %c0_i32_0 = arith.constant 0 : i32
    %c0_i32_1 = arith.constant 0 : i32
    return %c0_i32, %arg0, %c0_i32_0 : i32, i32, i32
  }
  func.func @transform_8(%arg0: i32) -> (i32, i32) {
    %c0_i32 = arith.constant 0 : i32
    %c0_i32_0 = arith.constant 0 : i32
    return %arg0, %c0_i32 : i32, i32
  }
  func.func @transform_9(%arg0: i32) -> (i32, i32, i32) {
    %c0_i32 = arith.constant 0 : i32
    %c0_i32_0 = arith.constant 0 : i32
    %c0_i32_1 = arith.constant 0 : i32
    return %c0_i32, %arg0, %c0_i32_0 : i32, i32, i32
  }
}

</mosaic_0001>

<llo_original>
// kernel: tpu_custom_call.1
$region0: #{tpu_custom_call.1}
  #allocation0 [shape = 'u32[]', space=smem, size = 0x4, offset = 0x4, fixed_abs, tag = 'smem constant byte address 0x4 - core index']
  #allocation1 [shape = 'u32[144,128]{1,0:T(1,128)}', space=vmem, size = 0x12000, scoped, tag = 'internal scratch']
  %s0 = inlined_call_operand.hbm [shape: f32[16,32], index: 0, kind: input, shape index: {}]
  %s1 = inlined_call_operand.vmem [shape: f32[32,52], index: 1, kind: input, shape index: {}]
  %s2 = inlined_call_operand.vmem [shape: f32[1,16], index: 2, kind: input, shape index: {}]
  %s3 = inlined_call_operand.vmem [shape: f32[16,24], index: 3, kind: input, shape index: {}]
  %s4 = inlined_call_operand.vmem [shape: f32[16,4], index: 4, kind: input, shape index: {}]
  %s5 = inlined_call_operand.vmem [shape: f32[16,4], index: 5, kind: input, shape index: {}]
  %s6 = inlined_call_operand.vmem [shape: f32[4,4], index: 6, kind: input, shape index: {}]
  %s7 = inlined_call_operand.vmem [shape: f32[4,16,8], index: 7, kind: output, shape index: {0}]
  %s8 = inlined_call_operand.vmem [shape: f32[16,4], index: 8, kind: output, shape index: {1}]
  %s9 = inlined_call_operand.vmem [shape: f32[2,16,12], index: 9, kind: output, shape index: {2}]
  %10 = xla_tuple %s7, %s8, %s9
  %s11 = sld [smem:[#allocation0]]
  $region58: #{tpu_custom_call.1} parent=0
    _
  %s13 = ssub.s32 1, %s11
  %s14 = scalar_select 0, %s13, %s11
  $region1: #{tpu_custom_call.1} parent=0
    #allocation2 [shape = 'u8[8192]{0}', space=vmem, size = 0x2000, scoped, tag = 'input window, operand 0, single buffered']
    #allocation3 [shape = 's32[1]{0}', space=sflag, size = 0x4, scoped, tag = 'scoped memory for tpu_custom_call.1']
    %15 = vsyncpa [#allocation3], 0
    // Predicated region
    $region2: #{tpu_custom_call.1} parent=1 // pred_check
      _
    $region3: #{tpu_custom_call.1} parent=1 // pred_check_branch
      %17 = sbr.rel (0) target = $region5
    $region4: #{tpu_custom_call.1} parent=1 // pred_region
      %s19 = ssub.s32 256, 256
      %20 = vsyncadd [#allocation3], %s19
      %s21 = sshll.u32 [#allocation2], 4
      %s22 = int_to_ptr.vmem [resolvable:$true] %s21
      %27 = dma.hbm_to_vmem [thread:$0]  %s0, 256, %s22, [#allocation3], 128, 128, 8
    $region5: #{tpu_custom_call.1} parent=1 // pred_fallthru
      _
    // Predicated region
    $region6: #{tpu_custom_call.1} parent=1 // pred_check
      _
    $region7: #{tpu_custom_call.1} parent=1 // pred_check_branch
      %29 = sbr.rel (0) target = $region9
    $region8: #{tpu_custom_call.1} parent=1 // pred_region
      _
    $region9: #{tpu_custom_call.1} parent=1 // pred_fallthru
      _
    // Predicated region
    $region10: #{tpu_custom_call.1} parent=1 // pred_check
      _
    $region11: #{tpu_custom_call.1} parent=1 // pred_check_branch
      %31 = sbr.rel (0) target = $region13
    $region12: #{tpu_custom_call.1} parent=1 // pred_region
      _
    $region13: #{tpu_custom_call.1} parent=1 // pred_fallthru
      _
    // Predicated region
    $region14: #{tpu_custom_call.1} parent=1 // pred_check
      _
    $region15: #{tpu_custom_call.1} parent=1 // pred_check_branch
      %33 = sbr.rel (0) target = $region17
    $region16: #{tpu_custom_call.1} parent=1 // pred_region
      _
    $region17: #{tpu_custom_call.1} parent=1 // pred_fallthru
      _
    // Predicated region
    $region18: #{tpu_custom_call.1} parent=1 // pred_check
      _
    $region19: #{tpu_custom_call.1} parent=1 // pred_check_branch
      %35 = sbr.rel (0) target = $region21
    $region20: #{tpu_custom_call.1} parent=1 // pred_region
      _
    $region21: #{tpu_custom_call.1} parent=1 // pred_fallthru
      _
    // Predicated region
    $region22: #{tpu_custom_call.1} parent=1 // pred_check
      _
    $region23: #{tpu_custom_call.1} parent=1 // pred_check_branch
      %37 = sbr.rel (0) target = $region25
    $region24: #{tpu_custom_call.1} parent=1 // pred_region
      _
    $region25: #{tpu_custom_call.1} parent=1 // pred_fallthru
      _
    // Predicated region
    $region26: #{tpu_custom_call.1} parent=1 // pred_check
      _
    $region27: #{tpu_custom_call.1} parent=1 // pred_check_branch
      %39 = sbr.rel (0) target = $region29
    $region28: #{tpu_custom_call.1} parent=1 // pred_region
      _
    $region29: #{tpu_custom_call.1} parent=1 // pred_fallthru
      _
    // Predicated region
    $region30: #{tpu_custom_call.1} parent=1 // pred_check
      _
    $region31: #{tpu_custom_call.1} parent=1 // pred_check_branch
      %41 = sbr.rel (0) target = $region33
    $region32: #{tpu_custom_call.1} parent=1 // pred_region
      %42 = dma.done [#allocation3], 256
    $region33: #{tpu_custom_call.1} parent=1 // pred_fallthru
      _
    %v43 = vld [vmem:[#allocation2] sm:$0xff]
    %v44 = vld [vmem:[#allocation2 + $0x8] sm:$0xff]
    %v45 = vld [vmem:[%s1] sm:$0xff]
    %v46 = vld [vmem:[%s1 + $0x8] sm:$0xff]
    %v47 = vld [vmem:[%s1 + $0x10] sm:$0xff]
    %v48 = vld [vmem:[%s1 + $0x18] sm:$0xff]
    %vm49 = vcmask 261120
    %v51 = vsel %vm49, %v43, 0
    %v54 = vsel %vm49, %v44, 0
    %56 = vmatprep.subr.mxu0 0.0
    %57 = vmatpush1.msra.mxu0 %v45
    %58 = vmatprep.subr.mxu0 0.0
    %59 = vmatpush1.msra.mxu0 %v46
    %60 = vmatprep.subr.mxu0 0.0
    %61 = vmatpush1.msra.mxu0 %v47
    %62 = vmatprep.subr.mxu0 0.0
    %63 = vmatpush1.msra.mxu0 %v48
    %64 = vmatprep.subr.mxu0 0.0
    %65 = vmatpush1.msra.mxu0 0.0
    %66 = vmatprep.subr.mxu0 0.0
    %67 = vmatpush1.msra.mxu0 0.0
    %68 = vmatprep.subr.mxu0 0.0
    %69 = vmatpush1.msra.mxu0 0.0
    %70 = vmatprep.subr.mxu0 0.0
    %71 = vmatpush1.msra.mxu0 0.0
    %72 = vmatprep.subr.mxu0 0.0
    %73 = vmatpush1.msra.mxu0 0.0
    %74 = vmatprep.subr.mxu0 0.0
    %75 = vmatpush1.msra.mxu0 0.0
    %76 = vmatprep.subr.mxu0 0.0
    %77 = vmatpush1.msra.mxu0 0.0
    %78 = vmatprep.subr.mxu0 0.0
    %79 = vmatpush1.msra.mxu0 0.0
    %80 = vmatprep.subr.mxu0 0.0
    %81 = vmatpush1.msra.mxu0 0.0
    %82 = vmatprep.subr.mxu0 0.0
    %83 = vmatpush1.msra.mxu0 0.0
    %84 = vmatprep.subr.mxu0 0.0
    %85 = vmatpush1.msra.mxu0 0.0
    %86 = vmatprep.subr.mxu0 0.0
    %87 = vmatpush1.msra.mxu0 0.0
    %88 = vmatprep.subr.mxu0 0.0
    %89 = vmatpush1.msra.mxu0 0.0
    %90 = vmatprep.subr.mxu0 0.0
    %91 = vmatpush1.msra.mxu0 0.0
    %92 = vmatprep.subr.mxu0 0.0
    %93 = vmatpush1.msra.mxu0 0.0
    %94 = vmatprep.subr.mxu0 0.0
    %95 = vmatpush1.msra.mxu0 0.0
    %96 = vmatprep.subr.mxu0 0.0
    %97 = vmatpush1.msra.mxu0 0.0
    %98 = vmatprep.subr.mxu0 0.0
    %99 = vmatpush1.msra.mxu0 0.0
    %100 = vmatprep.subr.mxu0 0.0
    %101 = vmatpush1.msra.mxu0 0.0
    %102 = vmatprep.subr.mxu0 0.0
    %103 = vmatpush1.msra.mxu0 0.0
    %104 = vmatprep.subr.mxu0 0.0
    %105 = vmatpush1.msra.mxu0 0.0
    %106 = vmatprep.subr.mxu0 0.0
    %107 = vmatpush1.msra.mxu0 0.0
    %108 = vmatprep.subr.mxu0 0.0
    %109 = vmatpush1.msra.mxu0 0.0
    %110 = vmatprep.subr.mxu0 0.0
    %111 = vmatpush1.msra.mxu0 0.0
    %112 = vmatprep.subr.mxu0 0.0
    %113 = vmatpush1.msra.mxu0 0.0
    %114 = vmatprep.subr.mxu0 0.0
    %115 = vmatpush1.msra.mxu0 0.0
    %116 = vmatprep.subr.mxu0 0.0
    %117 = vmatpush1.msra.mxu0 0.0
    %118 = vmatprep.subr.mxu0 0.0
    %119 = vmatpush1.msra.mxu0 0.0
    %120 = vmatprep.mubr.f32.mxu0 0.0
    %121 = vmatmul.mubr.f32.gmra.mrb[0].mxu0 %v51
    %v122 = vpop.f32.mrb[0].mxu0
    %v123 = vadd.f32 0.0, %v122
    %v124 = vpop.f32.mrb[0].mxu0
    %125 = vmatprep.mubr.f32.mxu0 0.0
    %126 = vmatmul.mubr.f32.gmra.mrb[0].mxu0 %v54
    %v127 = vpop.f32.mrb[0].mxu0
    %v128 = vadd.f32 0.0, %v127
    %v129 = vpop.f32.mrb[0].mxu0
    %130 = vdwg.mxu0
    %v131 = vmul.f32 %v123, %v123
    %v132 = vmul.f32 %v128, %v128
    %135 = vrot.lane.b32.xlu0 %v131, 96
    %v136 = vpop.permute.xlu0 %135
    %137 = vrot.lane.b32.xlu0 %v132, 96
    %v138 = vpop.permute.xlu0 %137
    %vm141 = vcmask 130048
    %v142 = vsel %vm141, %v136, 0.0
    %143 = vadd.xlane.f32.xlu0 %v142
    %v144 = vpop.xlane.xlu0 %143
    %v145 = vsel %vm141, %v138, 0.0
    %146 = vadd.xlane.f32.xlu0 %v145
    %v147 = vpop.xlane.xlu0 %146
    %v148 = vrcp.pop 16.0
    %v149 = vmul.f32 %v144, %v148
    %v150 = vmul.f32 %v147, %v148
    %v151 = vadd.f32 %v149, 1e-06
    %v152 = vadd.f32 %v150, 1e-06
    %v153 = vrsqrt.pop %v151
    %v154 = vrsqrt.pop %v152
    %v155 = vmul.f32 %v123, %v153
    %v156 = vmul.f32 %v128, %v154
    %v157 = vld [vmem:[%s2] sm:$0x1]
    %v159 = vlaneseq
    %v160 = vshrl.u32 %v159, 7
    %v161 = vsub.s32 0, %v160
    %v162 = vrot.slane %v157, %v161
    %163 = vrot.lane.b32.xlu0 %v162, 32
    %v164 = vpop.permute.xlu0 %163
    %v166 = vmul.f32 %v155, %v164
    %v167 = vmul.f32 %v156, %v164
    %v168 = vld [vmem:[%s3] sm:$0xff]
    %v169 = vld [vmem:[%s3 + $0x8] sm:$0xff]
    %172 = vrot.lane.b32.xlu0 %v166, 96
    %v173 = vpop.permute.xlu0 %172
    %174 = vrot.lane.b32.xlu0 %v167, 96
    %v175 = vpop.permute.xlu0 %174
    %v176 = vsel %vm141, %v173, 0
    %v178 = vsel %vm141, %v175, 0
    %180 = vmatprep.subr.mxu0 0.0
    %181 = vmatpush1.msra.mxu0 %v168
    %182 = vmatprep.subr.mxu0 0.0
    %183 = vmatpush1.msra.mxu0 %v169
    %184 = vmatprep.subr.mxu0 0.0
    %185 = vmatpush1.msra.mxu0 0.0
    %186 = vmatprep.subr.mxu0 0.0
    %187 = vmatpush1.msra.mxu0 0.0
    %188 = vmatprep.subr.mxu0 0.0
    %189 = vmatpush1.msra.mxu0 0.0
    %190 = vmatprep.subr.mxu0 0.0
    %191 = vmatpush1.msra.mxu0 0.0
    %192 = vmatprep.subr.mxu0 0.0
    %193 = vmatpush1.msra.mxu0 0.0
    %194 = vmatprep.subr.mxu0 0.0
    %195 = vmatpush1.msra.mxu0 0.0
    %196 = vmatprep.subr.mxu0 0.0
    %197 = vmatpush1.msra.mxu0 0.0
    %198 = vmatprep.subr.mxu0 0.0
    %199 = vmatpush1.msra.mxu0 0.0
    %200 = vmatprep.subr.mxu0 0.0
    %201 = vmatpush1.msra.mxu0 0.0
    %202 = vmatprep.subr.mxu0 0.0
    %203 = vmatpush1.msra.mxu0 0.0
    %204 = vmatprep.subr.mxu0 0.0
    %205 = vmatpush1.msra.mxu0 0.0
    %206 = vmatprep.subr.mxu0 0.0
    %207 = vmatpush1.msra.mxu0 0.0
    %208 = vmatprep.subr.mxu0 0.0
    %209 = vmatpush1.msra.mxu0 0.0
    %210 = vmatprep.subr.mxu0 0.0
    %211 = vmatpush1.msra.mxu0 0.0
    %212 = vmatprep.subr.mxu0 0.0
    %213 = vmatpush1.msra.mxu0 0.0
    %214 = vmatprep.subr.mxu0 0.0
    %215 = vmatpush1.msra.mxu0 0.0
    %216 = vmatprep.subr.mxu0 0.0
    %217 = vmatpush1.msra.mxu0 0.0
    %218 = vmatprep.subr.mxu0 0.0
    %219 = vmatpush1.msra.mxu0 0.0
    %220 = vmatprep.subr.mxu0 0.0
    %221 = vmatpush1.msra.mxu0 0.0
    %222 = vmatprep.subr.mxu0 0.0
    %223 = vmatpush1.msra.mxu0 0.0
    %224 = vmatprep.subr.mxu0 0.0
    %225 = vmatpush1.msra.mxu0 0.0
    %226 = vmatprep.subr.mxu0 0.0
    %227 = vmatpush1.msra.mxu0 0.0
    %228 = vmatprep.subr.mxu0 0.0
    %229 = vmatpush1.msra.mxu0 0.0
    %230 = vmatprep.subr.mxu0 0.0
    %231 = vmatpush1.msra.mxu0 0.0
    %232 = vmatprep.subr.mxu0 0.0
    %233 = vmatpush1.msra.mxu0 0.0
    %234 = vmatprep.subr.mxu0 0.0
    %235 = vmatpush1.msra.mxu0 0.0
    %236 = vmatprep.subr.mxu0 0.0
    %237 = vmatpush1.msra.mxu0 0.0
    %238 = vmatprep.subr.mxu0 0.0
    %239 = vmatpush1.msra.mxu0 0.0
    %240 = vmatprep.subr.mxu0 0.0
    %241 = vmatpush1.msra.mxu0 0.0
    %242 = vmatprep.subr.mxu0 0.0
    %243 = vmatpush1.msra.mxu0 0.0
    %244 = vmatprep.mubr.f32.mxu0 0.0
    %245 = vmatmul.mubr.f32.gmra.mrb[0].mxu0 %v176
    %v246 = vpop.f32.mrb[0].mxu0
    %v247 = vadd.f32 0.0, %v246
    %v248 = vpop.f32.mrb[0].mxu0
    %249 = vmatprep.mubr.f32.mxu0 0.0
    %250 = vmatmul.mubr.f32.gmra.mrb[0].mxu0 %v178
    %v251 = vpop.f32.mrb[0].mxu0
    %v252 = vadd.f32 0.0, %v251
    %v253 = vpop.f32.mrb[0].mxu0
    %254 = vdwg.mxu0
    %v255 = vld [vmem:[%s4] sm:$0xff]
    %v256 = vld [vmem:[%s4 + $0x8] sm:$0xff]
    %v257 = vld [vmem:[%s5] sm:$0xff]
    %v258 = vld [vmem:[%s5 + $0x8] sm:$0xff]
    %v259 = vld [vmem:[%s6] sm:$0xf]
    %262 = vrot.lane.b32.xlu0 %v255, 48
    %v263 = vpop.permute.xlu0 %262
    %264 = vrot.lane.b32.xlu0 %v256, 48
    %v265 = vpop.permute.xlu0 %264
    %v268 = vmul.f32 %v123, %v263
    %v269 = vmul.f32 %v128, %v265
    %272 = vrot.lane.b32.xlu0 %v123, 80
    %v273 = vpop.permute.xlu0 %272
    %274 = vrot.lane.b32.xlu0 %v128, 80
    %v275 = vpop.permute.xlu0 %274
    %vm276 = vcmask 31744
    %v277 = vsel %vm276, %v273, 0
    %v279 = vsel %vm276, %v275, 0
    %vm281 = vcmask 1043456
    %v283 = vsel %vm281, %v259, 0
    %285 = vmatprep.subr.mxu0 0.0
    %286 = vmatpush1.msra.mxu0 %v283
    %287 = vmatprep.subr.mxu0 0.0
    %288 = vmatpush1.msra.mxu0 0.0
    %289 = vmatprep.subr.mxu0 0.0
    %290 = vmatpush1.msra.mxu0 0.0
    %291 = vmatprep.subr.mxu0 0.0
    %292 = vmatpush1.msra.mxu0 0.0
    %293 = vmatprep.subr.mxu0 0.0
    %294 = vmatpush1.msra.mxu0 0.0
    %295 = vmatprep.subr.mxu0 0.0
    %296 = vmatpush1.msra.mxu0 0.0
    %297 = vmatprep.subr.mxu0 0.0
    %298 = vmatpush1.msra.mxu0 0.0
    %299 = vmatprep.subr.mxu0 0.0
    %300 = vmatpush1.msra.mxu0 0.0
    %301 = vmatprep.subr.mxu0 0.0
    %302 = vmatpush1.msra.mxu0 0.0
    %303 = vmatprep.subr.mxu0 0.0
    %304 = vmatpush1.msra.mxu0 0.0
    %305 = vmatprep.subr.mxu0 0.0
    %306 = vmatpush1.msra.mxu0 0.0
    %307 = vmatprep.subr.mxu0 0.0
    %308 = vmatpush1.msra.mxu0 0.0
    %309 = vmatprep.subr.mxu0 0.0
    %310 = vmatpush1.msra.mxu0 0.0
    %311 = vmatprep.subr.mxu0 0.0
    %312 = vmatpush1.msra.mxu0 0.0
    %313 = vmatprep.subr.mxu0 0.0
    %314 = vmatpush1.msra.mxu0 0.0
    %315 = vmatprep.subr.mxu0 0.0
    %316 = vmatpush1.msra.mxu0 0.0
    %317 = vmatprep.subr.mxu0 0.0
    %318 = vmatpush1.msra.mxu0 0.0
    %319 = vmatprep.subr.mxu0 0.0
    %320 = vmatpush1.msra.mxu0 0.0
    %321 = vmatprep.subr.mxu0 0.0
    %322 = vmatpush1.msra.mxu0 0.0
    %323 = vmatprep.subr.mxu0 0.0
    %324 = vmatpush1.msra.mxu0 0.0
    %325 = vmatprep.subr.mxu0 0.0
    %326 = vmatpush1.msra.mxu0 0.0
    %327 = vmatprep.subr.mxu0 0.0
    %328 = vmatpush1.msra.mxu0 0.0
    %329 = vmatprep.subr.mxu0 0.0
    %330 = vmatpush1.msra.mxu0 0.0
    %331 = vmatprep.subr.mxu0 0.0
    %332 = vmatpush1.msra.mxu0 0.0
    %333 = vmatprep.subr.mxu0 0.0
    %334 = vmatpush1.msra.mxu0 0.0
    %335 = vmatprep.subr.mxu0 0.0
    %336 = vmatpush1.msra.mxu0 0.0
    %337 = vmatprep.subr.mxu0 0.0
    %338 = vmatpush1.msra.mxu0 0.0
    %339 = vmatprep.subr.mxu0 0.0
    %340 = vmatpush1.msra.mxu0 0.0
    %341 = vmatprep.subr.mxu0 0.0
    %342 = vmatpush1.msra.mxu0 0.0
    %343 = vmatprep.subr.mxu0 0.0
    %344 = vmatpush1.msra.mxu0 0.0
    %345 = vmatprep.subr.mxu0 0.0
    %346 = vmatpush1.msra.mxu0 0.0
    %347 = vmatprep.subr.mxu0 0.0
    %348 = vmatpush1.msra.mxu0 0.0
    %349 = vmatprep.mubr.f32.mxu0 0.0
    %350 = vmatmul.mubr.f32.gmra.mrb[0].mxu0 %v277
    %v351 = vpop.f32.mrb[0].mxu0
    %v352 = vadd.f32 0.0, %v351
    %v353 = vpop.f32.mrb[0].mxu0
    %354 = vmatprep.mubr.f32.mxu0 0.0
    %355 = vmatmul.mubr.f32.gmra.mrb[0].mxu0 %v279
    %v356 = vpop.f32.mrb[0].mxu0
    %v357 = vadd.f32 0.0, %v356
    %v358 = vpop.f32.mrb[0].mxu0
    %359 = vdwg.mxu0
    %v360 = vmul.f32 %v352, %v257
    %v361 = vmul.f32 %v357, %v258
    %364 = vrot.lane.b32.xlu0 %v360, 48
    %v365 = vpop.permute.xlu0 %364
    %366 = vrot.lane.b32.xlu0 %v361, 48
    %v367 = vpop.permute.xlu0 %366
    %v370 = vadd.f32 %v268, %v365
    %v371 = vadd.f32 %v269, %v367
    %374 = vrot.lane.b32.xlu0 %v370, 80
    %v375 = vpop.permute.xlu0 %374
    %376 = vrot.lane.b32.xlu0 %v371, 80
    %v377 = vpop.permute.xlu0 %376
    %380 = vst.msk [vmem:[%s8] sm:$0xff] %vm276, %v375
    %381 = vst.msk [vmem:[%s8 + $0x8] sm:$0xff] %vm276, %v377
    %382 = vst.msk [vmem:[%s7] sm:$0xff] %vm276, %v123
    %383 = vst.msk [vmem:[%s7 + $0x8] sm:$0xff] %vm276, %v128
    %384 = vrot.lane.b32.xlu0 %v255, 4
    %v385 = vpop.permute.xlu0 %384
    %386 = vrot.lane.b32.xlu0 %v256, 4
    %v387 = vpop.permute.xlu0 %386
    %v390 = vmul.f32 %v123, %v385
    %v391 = vmul.f32 %v128, %v387
    %392 = vrot.lane.b32.xlu0 %v123, 124
    %v393 = vpop.permute.xlu0 %392
    %394 = vrot.lane.b32.xlu0 %v128, 124
    %v395 = vpop.permute.xlu0 %394
    %v396 = vsel %vm276, %v393, 0
    %v398 = vsel %vm276, %v395, 0
    %400 = vmatprep.subr.mxu0 0.0
    %401 = vmatpush1.msra.mxu0 %v283
    %402 = vmatprep.subr.mxu0 0.0
    %403 = vmatpush1.msra.mxu0 0.0
    %404 = vmatprep.subr.mxu0 0.0
    %405 = vmatpush1.msra.mxu0 0.0
    %406 = vmatprep.subr.mxu0 0.0
    %407 = vmatpush1.msra.mxu0 0.0
    %408 = vmatprep.subr.mxu0 0.0
    %409 = vmatpush1.msra.mxu0 0.0
    %410 = vmatprep.subr.mxu0 0.0
    %411 = vmatpush1.msra.mxu0 0.0
    %412 = vmatprep.subr.mxu0 0.0
    %413 = vmatpush1.msra.mxu0 0.0
    %414 = vmatprep.subr.mxu0 0.0
    %415 = vmatpush1.msra.mxu0 0.0
    %416 = vmatprep.subr.mxu0 0.0
    %417 = vmatpush1.msra.mxu0 0.0
    %418 = vmatprep.subr.mxu0 0.0
    %419 = vmatpush1.msra.mxu0 0.0
    %420 = vmatprep.subr.mxu0 0.0
    %421 = vmatpush1.msra.mxu0 0.0
    %422 = vmatprep.subr.mxu0 0.0
    %423 = vmatpush1.msra.mxu0 0.0
    %424 = vmatprep.subr.mxu0 0.0
    %425 = vmatpush1.msra.mxu0 0.0
    %426 = vmatprep.subr.mxu0 0.0
    %427 = vmatpush1.msra.mxu0 0.0
    %428 = vmatprep.subr.mxu0 0.0
    %429 = vmatpush1.msra.mxu0 0.0
    %430 = vmatprep.subr.mxu0 0.0
    %431 = vmatpush1.msra.mxu0 0.0
    %432 = vmatprep.subr.mxu0 0.0
    %433 = vmatpush1.msra.mxu0 0.0
    %434 = vmatprep.subr.mxu0 0.0
    %435 = vmatpush1.msra.mxu0 0.0
    %436 = vmatprep.subr.mxu0 0.0
    %437 = vmatpush1.msra.mxu0 0.0
    %438 = vmatprep.subr.mxu0 0.0
    %439 = vmatpush1.msra.mxu0 0.0
    %440 = vmatprep.subr.mxu0 0.0
    %441 = vmatpush1.msra.mxu0 0.0
    %442 = vmatprep.subr.mxu0 0.0
    %443 = vmatpush1.msra.mxu0 0.0
    %444 = vmatprep.subr.mxu0 0.0
    %445 = vmatpush1.msra.mxu0 0.0
    %446 = vmatprep.subr.mxu0 0.0
    %447 = vmatpush1.msra.mxu0 0.0
    %448 = vmatprep.subr.mxu0 0.0
    %449 = vmatpush1.msra.mxu0 0.0
    %450 = vmatprep.subr.mxu0 0.0
    %451 = vmatpush1.msra.mxu0 0.0
    %452 = vmatprep.subr.mxu0 0.0
    %453 = vmatpush1.msra.mxu0 0.0
    %454 = vmatprep.subr.mxu0 0.0
    %455 = vmatpush1.msra.mxu0 0.0
    %456 = vmatprep.subr.mxu0 0.0
    %457 = vmatpush1.msra.mxu0 0.0
    %458 = vmatprep.subr.mxu0 0.0
    %459 = vmatpush1.msra.mxu0 0.0
    %460 = vmatprep.subr.mxu0 0.0
    %461 = vmatpush1.msra.mxu0 0.0
    %462 = vmatprep.subr.mxu0 0.0
    %463 = vmatpush1.msra.mxu0 0.0
    %464 = vmatprep.mubr.f32.mxu0 0.0
    %465 = vmatmul.mubr.f32.gmra.mrb[0].mxu0 %v396
    %v466 = vpop.f32.mrb[0].mxu0
    %v467 = vadd.f32 0.0, %v466
    %v468 = vpop.f32.mrb[0].mxu0
    %469 = vmatprep.mubr.f32.mxu0 0.0
    %470 = vmatmul.mubr.f32.gmra.mrb[0].mxu0 %v398
    %v471 = vpop.f32.mrb[0].mxu0
    %v472 = vadd.f32 0.0, %v471
    %v473 = vpop.f32.mrb[0].mxu0
    %474 = vdwg.mxu0
    %v475 = vmul.f32 %v467, %v257
    %v476 = vmul.f32 %v472, %v258
    %479 = vrot.lane.b32.xlu0 %v475, 4
    %v480 = vpop.permute.xlu0 %479
    %481 = vrot.lane.b32.xlu0 %v476, 4
    %v482 = vpop.permute.xlu0 %481
    %v485 = vadd.f32 %v390, %v480
    %v486 = vadd.f32 %v391, %v482
    %vm487 = vcmask 64544
    %488 = vst.msk [vmem:[%s7] sm:$0xff] %vm487, %v485
    %489 = vst.msk [vmem:[%s7 + $0x8] sm:$0xff] %vm487, %v486
    %490 = vrot.lane.b32.xlu0 %v123, 120
    %v491 = vpop.permute.xlu0 %490
    %492 = vrot.lane.b32.xlu0 %v128, 120
    %v493 = vpop.permute.xlu0 %492
    %s496 = scalar_lea.vmem %s7, 16
    %497 = vst.msk [vmem:[%s496] sm:$0xff] %vm276, %v491
    %498 = vst.msk [vmem:[%s496 + $0x8] sm:$0xff] %vm276, %v493
    %499 = vrot.lane.b32.xlu0 %v255, 12
    %v500 = vpop.permute.xlu0 %499
    %501 = vrot.lane.b32.xlu0 %v256, 12
    %v502 = vpop.permute.xlu0 %501
    %v505 = vmul.f32 %v123, %v500
    %v506 = vmul.f32 %v128, %v502
    %507 = vrot.lane.b32.xlu0 %v123, 116
    %v508 = vpop.permute.xlu0 %507
    %509 = vrot.lane.b32.xlu0 %v128, 116
    %v510 = vpop.permute.xlu0 %509
    %v511 = vsel %vm276, %v508, 0
    %v513 = vsel %vm276, %v510, 0
    %515 = vmatprep.subr.mxu0 0.0
    %516 = vmatpush1.msra.mxu0 %v283
    %517 = vmatprep.subr.mxu0 0.0
    %518 = vmatpush1.msra.mxu0 0.0
    %519 = vmatprep.subr.mxu0 0.0
    %520 = vmatpush1.msra.mxu0 0.0
    %521 = vmatprep.subr.mxu0 0.0
    %522 = vmatpush1.msra.mxu0 0.0
    %523 = vmatprep.subr.mxu0 0.0
    %524 = vmatpush1.msra.mxu0 0.0
    %525 = vmatprep.subr.mxu0 0.0
    %526 = vmatpush1.msra.mxu0 0.0
    %527 = vmatprep.subr.mxu0 0.0
    %528 = vmatpush1.msra.mxu0 0.0
    %529 = vmatprep.subr.mxu0 0.0
    %530 = vmatpush1.msra.mxu0 0.0
    %531 = vmatprep.subr.mxu0 0.0
    %532 = vmatpush1.msra.mxu0 0.0
    %533 = vmatprep.subr.mxu0 0.0
    %534 = vmatpush1.msra.mxu0 0.0
    %535 = vmatprep.subr.mxu0 0.0
    %536 = vmatpush1.msra.mxu0 0.0
    %537 = vmatprep.subr.mxu0 0.0
    %538 = vmatpush1.msra.mxu0 0.0
    %539 = vmatprep.subr.mxu0 0.0
    %540 = vmatpush1.msra.mxu0 0.0
    %541 = vmatprep.subr.mxu0 0.0
    %542 = vmatpush1.msra.mxu0 0.0
    %543 = vmatprep.subr.mxu0 0.0
    %544 = vmatpush1.msra.mxu0 0.0
    %545 = vmatprep.subr.mxu0 0.0
    %546 = vmatpush1.msra.mxu0 0.0
    %547 = vmatprep.subr.mxu0 0.0
    %548 = vmatpush1.msra.mxu0 0.0
    %549 = vmatprep.subr.mxu0 0.0
    %550 = vmatpush1.msra.mxu0 0.0
    %551 = vmatprep.subr.mxu0 0.0
    %552 = vmatpush1.msra.mxu0 0.0
    %553 = vmatprep.subr.mxu0 0.0
    %554 = vmatpush1.msra.mxu0 0.0
    %555 = vmatprep.subr.mxu0 0.0
    %556 = vmatpush1.msra.mxu0 0.0
    %557 = vmatprep.subr.mxu0 0.0
    %558 = vmatpush1.msra.mxu0 0.0
    %559 = vmatprep.subr.mxu0 0.0
    %560 = vmatpush1.msra.mxu0 0.0
    %561 = vmatprep.subr.mxu0 0.0
    %562 = vmatpush1.msra.mxu0 0.0
    %563 = vmatprep.subr.mxu0 0.0
    %564 = vmatpush1.msra.mxu0 0.0
    %565 = vmatprep.subr.mxu0 0.0
    %566 = vmatpush1.msra.mxu0 0.0
    %567 = vmatprep.subr.mxu0 0.0
    %568 = vmatpush1.msra.mxu0 0.0
    %569 = vmatprep.subr.mxu0 0.0
    %570 = vmatpush1.msra.mxu0 0.0
    %571 = vmatprep.subr.mxu0 0.0
    %572 = vmatpush1.msra.mxu0 0.0
    %573 = vmatprep.subr.mxu0 0.0
    %574 = vmatpush1.msra.mxu0 0.0
    %575 = vmatprep.subr.mxu0 0.0
    %576 = vmatpush1.msra.mxu0 0.0
    %577 = vmatprep.subr.mxu0 0.0
    %578 = vmatpush1.msra.mxu0 0.0
    %579 = vmatprep.mubr.f32.mxu0 0.0
    %580 = vmatmul.mubr.f32.gmra.mrb[0].mxu0 %v511
    %v581 = vpop.f32.mrb[0].mxu0
    %v582 = vadd.f32 0.0, %v581
    %v583 = vpop.f32.mrb[0].mxu0
    %584 = vmatprep.mubr.f32.mxu0 0.0
    %585 = vmatmul.mubr.f32.gmra.mrb[0].mxu0 %v513
    %v586 = vpop.f32.mrb[0].mxu0
    %v587 = vadd.f32 0.0, %v586
    %v588 = vpop.f32.mrb[0].mxu0
    %589 = vdwg.mxu0
    %v590 = vmul.f32 %v582, %v257
    %v591 = vmul.f32 %v587, %v258
    %594 = vrot.lane.b32.xlu0 %v590, 12
    %v595 = vpop.permute.xlu0 %594
    %596 = vrot.lane.b32.xlu0 %v591, 12
    %v597 = vpop.permute.xlu0 %596
    %v600 = vadd.f32 %v505, %v595
    %v601 = vadd.f32 %v506, %v597
    %604 = vrot.lane.b32.xlu0 %v600, 120
    %v605 = vpop.permute.xlu0 %604
    %606 = vrot.lane.b32.xlu0 %v601, 120
    %v607 = vpop.permute.xlu0 %606
    %610 = vst.msk [vmem:[%s496] sm:$0xff] %vm487, %v605
    %611 = vst.msk [vmem:[%s496 + $0x8] sm:$0xff] %vm487, %v607
    %612 = vrot.lane.b32.xlu0 %v123, 112
    %v613 = vpop.permute.xlu0 %612
    %614 = vrot.lane.b32.xlu0 %v128, 112
    %v615 = vpop.permute.xlu0 %614
    %s618 = scalar_lea.vmem %s7, 32
    %619 = vst.msk [vmem:[%s618] sm:$0xff] %vm276, %v613
    %620 = vst.msk [vmem:[%s618 + $0x8] sm:$0xff] %vm276, %v615
    %621 = vrot.lane.b32.xlu0 %v255, 20
    %v622 = vpop.permute.xlu0 %621
    %623 = vrot.lane.b32.xlu0 %v256, 20
    %v624 = vpop.permute.xlu0 %623
    %v627 = vmul.f32 %v123, %v622
    %v628 = vmul.f32 %v128, %v624
    %629 = vrot.lane.b32.xlu0 %v123, 108
    %v630 = vpop.permute.xlu0 %629
    %631 = vrot.lane.b32.xlu0 %v128, 108
    %v632 = vpop.permute.xlu0 %631
    %v633 = vsel %vm276, %v630, 0
    %v635 = vsel %vm276, %v632, 0
    %637 = vmatprep.subr.mxu0 0.0
    %638 = vmatpush1.msra.mxu0 %v283
    %639 = vmatprep.subr.mxu0 0.0
    %640 = vmatpush1.msra.mxu0 0.0
    %641 = vmatprep.subr.mxu0 0.0
    %642 = vmatpush1.msra.mxu0 0.0
    %643 = vmatprep.subr.mxu0 0.0
    %644 = vmatpush1.msra.mxu0 0.0
    %645 = vmatprep.subr.mxu0 0.0
    %646 = vmatpush1.msra.mxu0 0.0
    %647 = vmatprep.subr.mxu0 0.0
    %648 = vmatpush1.msra.mxu0 0.0
    %649 = vmatprep.subr.mxu0 0.0
    %650 = vmatpush1.msra.mxu0 0.0
    %651 = vmatprep.subr.mxu0 0.0
    %652 = vmatpush1.msra.mxu0 0.0
    %653 = vmatprep.subr.mxu0 0.0
    %654 = vmatpush1.msra.mxu0 0.0
    %655 = vmatprep.subr.mxu0 0.0
    %656 = vmatpush1.msra.mxu0 0.0
    %657 = vmatprep.subr.mxu0 0.0
    %658 = vmatpush1.msra.mxu0 0.0
    %659 = vmatprep.subr.mxu0 0.0
    %660 = vmatpush1.msra.mxu0 0.0
    %661 = vmatprep.subr.mxu0 0.0
    %662 = vmatpush1.msra.mxu0 0.0
    %663 = vmatprep.subr.mxu0 0.0
    %664 = vmatpush1.msra.mxu0 0.0
    %665 = vmatprep.subr.mxu0 0.0
    %666 = vmatpush1.msra.mxu0 0.0
    %667 = vmatprep.subr.mxu0 0.0
    %668 = vmatpush1.msra.mxu0 0.0
    %669 = vmatprep.subr.mxu0 0.0
    %670 = vmatpush1.msra.mxu0 0.0
    %671 = vmatprep.subr.mxu0 0.0
    %672 = vmatpush1.msra.mxu0 0.0
    %673 = vmatprep.subr.mxu0 0.0
    %674 = vmatpush1.msra.mxu0 0.0
    %675 = vmatprep.subr.mxu0 0.0
    %676 = vmatpush1.msra.mxu0 0.0
    %677 = vmatprep.subr.mxu0 0.0
    %678 = vmatpush1.msra.mxu0 0.0
    %679 = vmatprep.subr.mxu0 0.0
    %680 = vmatpush1.msra.mxu0 0.0
    %681 = vmatprep.subr.mxu0 0.0
    %682 = vmatpush1.msra.mxu0 0.0
    %683 = vmatprep.subr.mxu0 0.0
    %684 = vmatpush1.msra.mxu0 0.0
    %685 = vmatprep.subr.mxu0 0.0
    %686 = vmatpush1.msra.mxu0 0.0
    %687 = vmatprep.subr.mxu0 0.0
    %688 = vmatpush1.msra.mxu0 0.0
    %689 = vmatprep.subr.mxu0 0.0
    %690 = vmatpush1.msra.mxu0 0.0
    %691 = vmatprep.subr.mxu0 0.0
    %692 = vmatpush1.msra.mxu0 0.0
    %693 = vmatprep.subr.mxu0 0.0
    %694 = vmatpush1.msra.mxu0 0.0
    %695 = vmatprep.subr.mxu0 0.0
    %696 = vmatpush1.msra.mxu0 0.0
    %697 = vmatprep.subr.mxu0 0.0
    %698 = vmatpush1.msra.mxu0 0.0
    %699 = vmatprep.subr.mxu0 0.0
    %700 = vmatpush1.msra.mxu0 0.0
    %701 = vmatprep.mubr.f32.mxu0 0.0
    %702 = vmatmul.mubr.f32.gmra.mrb[0].mxu0 %v633
    %v703 = vpop.f32.mrb[0].mxu0
    %v704 = vadd.f32 0.0, %v703
    %v705 = vpop.f32.mrb[0].mxu0
    %706 = vmatprep.mubr.f32.mxu0 0.0
    %707 = vmatmul.mubr.f32.gmra.mrb[0].mxu0 %v635
    %v708 = vpop.f32.mrb[0].mxu0
    %v709 = vadd.f32 0.0, %v708
    %v710 = vpop.f32.mrb[0].mxu0
    %711 = vdwg.mxu0
    %v712 = vmul.f32 %v704, %v257
    %v713 = vmul.f32 %v709, %v258
    %716 = vrot.lane.b32.xlu0 %v712, 20
    %v717 = vpop.permute.xlu0 %716
    %718 = vrot.lane.b32.xlu0 %v713, 20
    %v719 = vpop.permute.xlu0 %718
    %v722 = vadd.f32 %v627, %v717
    %v723 = vadd.f32 %v628, %v719
    %726 = vrot.lane.b32.xlu0 %v722, 112
    %v727 = vpop.permute.xlu0 %726
    %728 = vrot.lane.b32.xlu0 %v723, 112
    %v729 = vpop.permute.xlu0 %728
    %732 = vst.msk [vmem:[%s618] sm:$0xff] %vm487, %v727
    %733 = vst.msk [vmem:[%s618 + $0x8] sm:$0xff] %vm487, %v729
    %734 = vrot.lane.b32.xlu0 %v123, 104
    %v735 = vpop.permute.xlu0 %734
    %736 = vrot.lane.b32.xlu0 %v128, 104
    %v737 = vpop.permute.xlu0 %736
    %s740 = scalar_lea.vmem %s7, 48
    %741 = vst.msk [vmem:[%s740] sm:$0xff] %vm276, %v735
    %742 = vst.msk [vmem:[%s740 + $0x8] sm:$0xff] %vm276, %v737
    %743 = vrot.lane.b32.xlu0 %v255, 28
    %v744 = vpop.permute.xlu0 %743
    %745 = vrot.lane.b32.xlu0 %v256, 28
    %v746 = vpop.permute.xlu0 %745
    %v749 = vmul.f32 %v123, %v744
    %v750 = vmul.f32 %v128, %v746
    %751 = vrot.lane.b32.xlu0 %v123, 100
    %v752 = vpop.permute.xlu0 %751
    %753 = vrot.lane.b32.xlu0 %v128, 100
    %v754 = vpop.permute.xlu0 %753
    %v755 = vsel %vm276, %v752, 0
    %v757 = vsel %vm276, %v754, 0
    %759 = vmatprep.subr.mxu0 0.0
    %760 = vmatpush1.msra.mxu0 %v283
    %761 = vmatprep.subr.mxu0 0.0
    %762 = vmatpush1.msra.mxu0 0.0
    %763 = vmatprep.subr.mxu0 0.0
    %764 = vmatpush1.msra.mxu0 0.0
    %765 = vmatprep.subr.mxu0 0.0
    %766 = vmatpush1.msra.mxu0 0.0
    %767 = vmatprep.subr.mxu0 0.0
    %768 = vmatpush1.msra.mxu0 0.0
    %769 = vmatprep.subr.mxu0 0.0
    %770 = vmatpush1.msra.mxu0 0.0
    %771 = vmatprep.subr.mxu0 0.0
    %772 = vmatpush1.msra.mxu0 0.0
    %773 = vmatprep.subr.mxu0 0.0
    %774 = vmatpush1.msra.mxu0 0.0
    %775 = vmatprep.subr.mxu0 0.0
    %776 = vmatpush1.msra.mxu0 0.0
    %777 = vmatprep.subr.mxu0 0.0
    %778 = vmatpush1.msra.mxu0 0.0
    %779 = vmatprep.subr.mxu0 0.0
    %780 = vmatpush1.msra.mxu0 0.0
    %781 = vmatprep.subr.mxu0 0.0
    %782 = vmatpush1.msra.mxu0 0.0
    %783 = vmatprep.subr.mxu0 0.0
    %784 = vmatpush1.msra.mxu0 0.0
    %785 = vmatprep.subr.mxu0 0.0
    %786 = vmatpush1.msra.mxu0 0.0
    %787 = vmatprep.subr.mxu0 0.0
    %788 = vmatpush1.msra.mxu0 0.0
    %789 = vmatprep.subr.mxu0 0.0
    %790 = vmatpush1.msra.mxu0 0.0
    %791 = vmatprep.subr.mxu0 0.0
    %792 = vmatpush1.msra.mxu0 0.0
    %793 = vmatprep.subr.mxu0 0.0
    %794 = vmatpush1.msra.mxu0 0.0
    %795 = vmatprep.subr.mxu0 0.0
    %796 = vmatpush1.msra.mxu0 0.0
    %797 = vmatprep.subr.mxu0 0.0
    %798 = vmatpush1.msra.mxu0 0.0
    %799 = vmatprep.subr.mxu0 0.0
    %800 = vmatpush1.msra.mxu0 0.0
    %801 = vmatprep.subr.mxu0 0.0
    %802 = vmatpush1.msra.mxu0 0.0
    %803 = vmatprep.subr.mxu0 0.0
    %804 = vmatpush1.msra.mxu0 0.0
    %805 = vmatprep.subr.mxu0 0.0
    %806 = vmatpush1.msra.mxu0 0.0
    %807 = vmatprep.subr.mxu0 0.0
    %808 = vmatpush1.msra.mxu0 0.0
    %809 = vmatprep.subr.mxu0 0.0
    %810 = vmatpush1.msra.mxu0 0.0
    %811 = vmatprep.subr.mxu0 0.0
    %812 = vmatpush1.msra.mxu0 0.0
    %813 = vmatprep.subr.mxu0 0.0
    %814 = vmatpush1.msra.mxu0 0.0
    %815 = vmatprep.subr.mxu0 0.0
    %816 = vmatpush1.msra.mxu0 0.0
    %817 = vmatprep.subr.mxu0 0.0
    %818 = vmatpush1.msra.mxu0 0.0
    %819 = vmatprep.subr.mxu0 0.0
    %820 = vmatpush1.msra.mxu0 0.0
    %821 = vmatprep.subr.mxu0 0.0
    %822 = vmatpush1.msra.mxu0 0.0
    %823 = vmatprep.mubr.f32.mxu0 0.0
    %824 = vmatmul.mubr.f32.gmra.mrb[0].mxu0 %v755
    %v825 = vpop.f32.mrb[0].mxu0
    %v826 = vadd.f32 0.0, %v825
    %v827 = vpop.f32.mrb[0].mxu0
    %828 = vmatprep.mubr.f32.mxu0 0.0
    %829 = vmatmul.mubr.f32.gmra.mrb[0].mxu0 %v757
    %v830 = vpop.f32.mrb[0].mxu0
    %v831 = vadd.f32 0.0, %v830
    %v832 = vpop.f32.mrb[0].mxu0
    %833 = vdwg.mxu0
    %v834 = vmul.f32 %v826, %v257
    %v835 = vmul.f32 %v831, %v258
    %838 = vrot.lane.b32.xlu0 %v834, 28
    %v839 = vpop.permute.xlu0 %838
    %840 = vrot.lane.b32.xlu0 %v835, 28
    %v841 = vpop.permute.xlu0 %840
    %v844 = vadd.f32 %v749, %v839
    %v845 = vadd.f32 %v750, %v841
    %848 = vrot.lane.b32.xlu0 %v844, 104
    %v849 = vpop.permute.xlu0 %848
    %850 = vrot.lane.b32.xlu0 %v845, 104
    %v851 = vpop.permute.xlu0 %850
    %854 = vst.msk [vmem:[%s740] sm:$0xff] %vm487, %v849
    %855 = vst.msk [vmem:[%s740 + $0x8] sm:$0xff] %vm487, %v851
    %vm856 = vcmask 97280
    %857 = vst.msk [vmem:[%s9] sm:$0xff] %vm856, %v247
    %858 = vst.msk [vmem:[%s9 + $0x8] sm:$0xff] %vm856, %v252
    %861 = vrot.lane.b32.xlu0 %v247, 116
    %v862 = vpop.permute.xlu0 %861
    %863 = vrot.lane.b32.xlu0 %v252, 116
    %v864 = vpop.permute.xlu0 %863
    %s867 = scalar_lea.vmem %s9, 16
    %868 = vst.msk [vmem:[%s867] sm:$0xff] %vm856, %v862
    %869 = vst.msk [vmem:[%s867 + $0x8] sm:$0xff] %vm856, %v864
    // Predicated region
    $region34: #{tpu_custom_call.1} parent=1 // pred_check
      _
    $region35: #{tpu_custom_call.1} parent=1 // pred_check_branch
      %871 = sbr.rel (0) target = $region37
    $region36: #{tpu_custom_call.1} parent=1 // pred_region
      _
    $region37: #{tpu_custom_call.1} parent=1 // pred_fallthru
      _
    // Predicated region
    $region38: #{tpu_custom_call.1} parent=1 // pred_check
      _
    $region39: #{tpu_custom_call.1} parent=1 // pred_check_branch
      %873 = sbr.rel (0) target = $region41
    $region40: #{tpu_custom_call.1} parent=1 // pred_region
      _
    $region41: #{tpu_custom_call.1} parent=1 // pred_fallthru
      _
    // Predicated region
    $region42: #{tpu_custom_call.1} parent=1 // pred_check
      _
    $region43: #{tpu_custom_call.1} parent=1 // pred_check_branch
      %875 = sbr.rel (0) target = $region45
    $region44: #{tpu_custom_call.1} parent=1 // pred_region
      _
    $region45: #{tpu_custom_call.1} parent=1 // pred_fallthru
      _
    // Predicated region
    $region46: #{tpu_custom_call.1} parent=1 // pred_check
      _
    $region47: #{tpu_custom_call.1} parent=1 // pred_check_branch
      %877 = sbr.rel (0) target = $region49
    $region48: #{tpu_custom_call.1} parent=1 // pred_region
      _
    $region49: #{tpu_custom_call.1} parent=1 // pred_fallthru
      _
    // Predicated region
    $region50: #{tpu_custom_call.1} parent=1 // pred_check
      _
    $region51: #{tpu_custom_call.1} parent=1 // pred_check_branch
      %879 = sbr.rel (0) target = $region53
    $region52: #{tpu_custom_call.1} parent=1 // pred_region
      _
    $region53: #{tpu_custom_call.1} parent=1 // pred_fallthru
      _
    // Predicated region
    $region54: #{tpu_custom_call.1} parent=1 // pred_check
      _
    $region55: #{tpu_custom_call.1} parent=1 // pred_check_branch
      %881 = sbr.rel (0) target = $region57
    $region56: #{tpu_custom_call.1} parent=1 // pred_region
      _
    $region57: #{tpu_custom_call.1} parent=1 // pred_fallthru
      _
    %882 = vsyncpa [#allocation3], 1

</llo_original>
